<compile_context>
chip_gen: v7x
topology: tpu7x:2x2x1
jax: 0.10.0
libtpu: 0.0.40
codegen_flags: <defaults>
</compile_context>

<pallas_src>
import jax
import jax.numpy as jnp
from jax.experimental import pallas as pl
from jax.experimental.pallas import tpu as pltpu


# ---------------------------------------------------------------------------
# Kernels
# ---------------------------------------------------------------------------

def _model_kernel_lanes(x_ref, o_ref):
    """Lane-dense path.  x_ref: (H, W, TB); o_ref: (Ho, Wo, TB).

    Planes are on the lane axis, W on the sublane axis, H on the leading axis.
    """
    Ho, Wo, _ = o_ref.shape

    # Horizontal (W) pairwise sum via two ref views: an aligned one and one at
    # a static sublane offset of 1 (shifted VMEM load; XLU/sublane-shift cost
    # sits off the VPU slots and is hidden under the HBM DMA of this
    # memory-bound kernel).  The horizontal sum is reused for both rows of the
    # 2x2 window (separable pooling).
    x0 = x_ref[:, pl.ds(0, Wo), :]          # x[h, w,   b]   (H, Wo, TB)
    x1 = x_ref[:, pl.ds(1, Wo), :]          # x[h, w+1, b]   (H, Wo, TB)
    row = x0 + x1

    # Vertical (H) pairwise sum: H is a leading (non-tiled) axis, so offset-0
    # and offset-1 slices are plain tile selections -- no relayout.
    v1 = 0.25 * (row[:-1] + row[1:])        # (Ho, Wo, TB) == AvgPool2d(2,1,0)

    # v2 == v3 == v1 (1x1 pools are identity on the valid region).
    # tanh lands on the EUP slot, effectively free next to the VALU work.
    v6 = jnp.tanh(v1) + v1 * v1

    # x1 cropped to the pooled extent is exactly x0[:Ho].  Output last dim is a
    # multiple of 128 -> unmasked, lane-dense stores.
    o_ref[...] = x0[:Ho] * v6


def _model_kernel_planes(x_ref, o_ref):
    """Small-B path.  x_ref: (B, H, W); o_ref: (B, Ho, Wo)."""
    x = x_ref[...]
    # Separable 2x2 average pool (stride 1, no padding).
    row = x[:, :, :-1] + x[:, :, 1:]                 # (B, H,  Wo)
    v1 = 0.25 * (row[:, :-1, :] + row[:, 1:, :])     # (B, Ho, Wo)
    v6 = jnp.tanh(v1) + v1 * v1
    # NOTE: lanes/sublanes beyond (Ho, Wo) inside the (8,128) tile padding may
    # hold garbage (possibly NaN after tanh); they are never stored because the
    # output store is masked to the true (Ho, Wo) extent.
    o_ref[...] = x[:, :-1, :-1] * v6


# ---------------------------------------------------------------------------
# Wrappers
# ---------------------------------------------------------------------------

def _round_up(a, m):
    return (a + m - 1) // m * m


def _forward_lane_dense(x_flat, H, W, Ho, Wo):
    """B >= 128: plane axis on lanes, lane-dense blocks/stores."""
    B = x_flat.shape[0]
    LANE = 128
    itemsize = jnp.dtype(x_flat.dtype).itemsize

    # Padded-tile VMEM footprint per lane of one (input + output) block:
    #   input  block (H, W, tb):  H  * round_up(W , 8) lanes-worth of f32
    #   output block (Ho, Wo, tb): Ho * round_up(Wo, 8)
    bytes_per_lane = (H * _round_up(W, 8) + Ho * _round_up(Wo, 8)) * itemsize
    # Keep the double-buffered in+out blocks under ~6 MiB: fits v5e's 16 MiB
    # default scoped-VMEM limit (with headroom for intermediates) and is far
    # inside v7x's 32 MiB default / 64 MiB physical VMEM.
    budget = 6 << 20
    tb = (budget // (2 * bytes_per_lane)) // LANE * LANE
    tb = max(LANE, min(512, tb))

    b_pad_min = _round_up(B, LANE)
    # Keep >= 2 grid steps when possible so ("parallel",) can shard the plane
    # axis across v7x's two TensorCores (megacore).
    if b_pad_min >= 2 * LANE:
        tb = max(LANE, min(tb, (b_pad_min // 2) // LANE * LANE))
    b_pad = _round_up(B, tb)

    # Layout plumbing in the wrapper: plane axis last (lanes).  Zero-pad the
    # plane axis to a multiple of tb; tanh(0) + 0*0 = 0, so no NaNs in padding.
    x_t = jnp.transpose(x_flat, (1, 2, 0))            # (H, W, B)
    if b_pad != B:
        x_t = jnp.pad(x_t, ((0, 0), (0, 0), (0, b_pad - B)))

    grid = (b_pad // tb,)
    out_t = pl.pallas_call(
        _model_kernel_lanes,
        out_shape=jax.ShapeDtypeStruct((Ho, Wo, b_pad), x_flat.dtype),
        grid=grid,
        in_specs=[pl.BlockSpec((H, W, tb), lambda b: (0, 0, b))],
        out_specs=pl.BlockSpec((Ho, Wo, tb), lambda b: (0, 0, b)),
        compiler_params=pltpu.CompilerParams(
            dimension_semantics=("parallel",)),
    )(x_t)

    return jnp.transpose(out_t, (2, 0, 1))[:B]         # (B, Ho, Wo)


def _forward_plane_chunk(x_flat, H, W, Ho, Wo):
    """B < 128: one grid step over all planes, (B, H, W) layout.

    Padded-tile footprint per 18x18 f32 plane is round_up(18,8)*round_up(18,128)
    *4 = 12 KiB (not H*W*4 = 1.3 KiB); even 127 in+out planes double-buffered is
    ~6 MiB, within every generation's default scoped-VMEM limit.
    """
    B = x_flat.shape[0]
    return pl.pallas_call(
        _model_kernel_planes,
        out_shape=jax.ShapeDtypeStruct((B, Ho, Wo), x_flat.dtype),
        grid=(1,),
        in_specs=[pl.BlockSpec((B, H, W), lambda b: (b, 0, 0))],
        out_specs=pl.BlockSpec((B, Ho, Wo), lambda b: (b, 0, 0)),
        compiler_params=pltpu.CompilerParams(
            dimension_semantics=("arbitrary",)),
    )(x_flat)


def model_forward(x):
    """x: (N, C, H, W) float32.  Returns (N, C, H-1, W-1) float32."""
    N, C, H, W = x.shape
    B = N * C
    Ho, Wo = H - 1, W - 1
    x_flat = x.reshape(B, H, W)

    if B >= 128:
        out = _forward_lane_dense(x_flat, H, W, Ho, Wo)
    else:
        # Tiny plane count: single overhead-bound grid step (for the literal
        # (1,3,18,18) module shape an XLA-fused graph would avoid the
        # custom-call boundary entirely; we keep the kernel path here).
        out = _forward_plane_chunk(x_flat, H, W, Ho, Wo)

    return out.reshape(N, C, Ho, Wo)


# ---------------------------------------------------------------------------
# Pure-JAX reference of the same (shape-repaired) semantics.
# ---------------------------------------------------------------------------

def _reference(x):
    v1 = 0.25 * (x[..., :-1, :-1] + x[..., :-1, 1:]
                 + x[..., 1:, :-1] + x[..., 1:, 1:])
    v6 = jnp.tanh(v1) + v1 * v1
    return x[..., :-1, :-1] * v6


if __name__ == "__main__":
    key = jax.random.PRNGKey(0)
    k1, k2 = jax.random.split(key)

    # Literal module shape -> small-B (plane-chunk) path.
    x_small = jax.random.normal(k1, (1, 3, 18, 18), dtype=jnp.float32)
    out_small = jax.block_until_ready(model_forward(x_small))
    ref_small = _reference(x_small)
    assert out_small.shape == (1, 3, 17, 17), out_small.shape
    assert jnp.allclose(out_small, ref_small, atol=1e-5, rtol=1e-5), \
        "small-shape mismatch vs reference"

    # Larger plane count -> lane-dense (plane-on-lanes) path (B = 256, 2 steps).
    x_big = jax.random.normal(k2, (2, 128, 18, 18), dtype=jnp.float32)
    out_big = jax.block_until_ready(model_forward(x_big))
    ref_big = _reference(x_big)
    assert out_big.shape == (2, 128, 17, 17), out_big.shape
    assert jnp.allclose(out_big, ref_big, atol=1e-5, rtol=1e-5), \
        "lane-dense path mismatch vs reference"

    print("KERNEL_OK")
</pallas_src>

<mosaic_0001>
module attributes {stable_mosaic.version = 11 : i64} {
  func.func @_model_kernel_planes(%arg0: i32, %arg1: memref<3x18x18xf32, #tpu.memory_space<vmem>>, %arg2: memref<3x17x17xf32, #tpu.memory_space<vmem>>) attributes {dimension_semantics = [#tpu.dimension_semantics<arbitrary>], iteration_bounds = array<i64: 1>, scalar_prefetch = 0 : i64, scratch_operands = 0 : i64, tpu.core_type = #tpu.core_type<tc>, window_params = [{transform_indices = @transform_0, window_bounds = array<i64: 3, 18, 18>}, {transform_indices = @transform_1, window_bounds = array<i64: 3, 17, 17>}]} {
    %c0 = arith.constant 0 : index
    %c0_0 = arith.constant 0 : index
    %c0_1 = arith.constant 0 : index
    %0 = vector.load %arg1[%c0, %c0_0, %c0_1] : memref<3x18x18xf32, #tpu.memory_space<vmem>>, vector<3x18x18xf32>
    %1 = vector.extract_strided_slice %0 {offsets = [0, 0, 0], sizes = [3, 18, 17], strides = [1, 1, 1]} : vector<3x18x18xf32> to vector<3x18x17xf32>
    %2 = vector.extract_strided_slice %0 {offsets = [0, 0, 1], sizes = [3, 18, 17], strides = [1, 1, 1]} : vector<3x18x18xf32> to vector<3x18x17xf32>
    %3 = arith.addf %1, %2 : vector<3x18x17xf32>
    %4 = vector.extract_strided_slice %3 {offsets = [0, 0, 0], sizes = [3, 17, 17], strides = [1, 1, 1]} : vector<3x18x17xf32> to vector<3x17x17xf32>
    %5 = vector.extract_strided_slice %3 {offsets = [0, 1, 0], sizes = [3, 17, 17], strides = [1, 1, 1]} : vector<3x18x17xf32> to vector<3x17x17xf32>
    %6 = arith.addf %4, %5 : vector<3x17x17xf32>
    %cst = arith.constant 2.500000e-01 : f32
    %7 = vector.broadcast %cst : f32 to vector<3x17x17xf32>
    %8 = arith.mulf %7, %6 : vector<3x17x17xf32>
    %9 = math.tanh %8 : vector<3x17x17xf32>
    %10 = arith.mulf %8, %8 : vector<3x17x17xf32>
    %11 = arith.addf %9, %10 : vector<3x17x17xf32>
    %12 = vector.extract_strided_slice %0 {offsets = [0, 0, 0], sizes = [3, 17, 17], strides = [1, 1, 1]} : vector<3x18x18xf32> to vector<3x17x17xf32>
    %13 = arith.mulf %12, %11 : vector<3x17x17xf32>
    %c0_2 = arith.constant 0 : index
    %c0_3 = arith.constant 0 : index
    %c0_4 = arith.constant 0 : index
    %14 = vector.load %arg2[%c0_2, %c0_3, %c0_4] : memref<3x17x17xf32, #tpu.memory_space<vmem>>, vector<3x17x17xf32>
    tpu.vector_store %arg2[%c0_2, %c0_3, %c0_4], %13 {strides = array<i32>} : memref<3x17x17xf32, #tpu.memory_space<vmem>>, vector<3x17x17xf32>,
    return
  }
  func.func @transform_0(%arg0: i32) -> (i32, i32, i32) {
    %c0_i32 = arith.constant 0 : i32
    %c0_i32_0 = arith.constant 0 : i32
    %c0_i32_1 = arith.constant 0 : i32
    return %arg0, %c0_i32, %c0_i32_0 : i32, i32, i32
  }
  func.func @transform_1(%arg0: i32) -> (i32, i32, i32) {
    %c0_i32 = arith.constant 0 : i32
    %c0_i32_0 = arith.constant 0 : i32
    %c0_i32_1 = arith.constant 0 : i32
    return %arg0, %c0_i32, %c0_i32_0 : i32, i32, i32
  }
}

</mosaic_0001>

<llo_original>
// kernel: tpu_custom_call.1
$region0: #{tpu_custom_call.1}
  #allocation0 [shape = 'u32[]', space=smem, size = 0x4, offset = 0x4, fixed_abs, tag = 'smem constant byte address 0x4 - core index']
  #allocation1 [shape = 'u32[144,128]{1,0:T(1,128)}', space=vmem, size = 0x12000, scoped, tag = 'internal scratch']
  %s0 = inlined_call_operand.hbm [shape: f32[3,18,18], index: 0, kind: input, shape index: {}]
  %s1 = inlined_call_operand.vmem [shape: f32[3,17,17], index: 1, kind: output, shape index: {}]
  %s2 = sld [smem:[#allocation0]]
  $region18: #{tpu_custom_call.1} parent=0
    _
  %s4 = ssub.s32 1, %s2
  %s5 = scalar_select 0, %s4, %s2
  $region1: #{tpu_custom_call.1} parent=0
    #allocation2 [shape = 'u8[36864]{0}', space=vmem, size = 0x9000, scoped, tag = 'input window, operand 0, single buffered']
    #allocation3 [shape = 's32[1]{0}', space=sflag, size = 0x4, scoped, tag = 'scoped memory for tpu_custom_call.1']
    %6 = vsyncpa [#allocation3], 0
    // Predicated region
    $region2: #{tpu_custom_call.1} parent=1 // pred_check
      _
    $region3: #{tpu_custom_call.1} parent=1 // pred_check_branch
      %8 = sbr.rel (0) target = $region5
    $region4: #{tpu_custom_call.1} parent=1 // pred_region
      %s10 = ssub.s32 1152, 1152
      %11 = vsyncadd [#allocation3], %s10
      %s12 = sshll.u32 [#allocation2], 4
      %s13 = int_to_ptr.vmem [resolvable:$true] %s12
      %18 = dma.hbm_to_vmem [thread:$0]  %s0, 1152, %s13, [#allocation3], 128, 128, 8
    $region5: #{tpu_custom_call.1} parent=1 // pred_fallthru
      _
    // Predicated region
    $region6: #{tpu_custom_call.1} parent=1 // pred_check
      _
    $region7: #{tpu_custom_call.1} parent=1 // pred_check_branch
      %20 = sbr.rel (0) target = $region9
    $region8: #{tpu_custom_call.1} parent=1 // pred_region
      %21 = dma.done [#allocation3], 1152
    $region9: #{tpu_custom_call.1} parent=1 // pred_fallthru
      _
    %v22 = vld [vmem:[#allocation2] sm:$0xff]
    %v23 = vld [vmem:[#allocation2 + $0x8] sm:$0xff]
    %v24 = vld [vmem:[#allocation2 + $0x10] sm:$0x3]
    %v25 = vld [vmem:[#allocation2 + $0x18] sm:$0xff]
    %v26 = vld [vmem:[#allocation2 + $0x20] sm:$0xff]
    %v27 = vld [vmem:[#allocation2 + $0x28] sm:$0x3]
    %v28 = vld [vmem:[#allocation2 + $0x30] sm:$0xff]
    %v29 = vld [vmem:[#allocation2 + $0x38] sm:$0xff]
    %v30 = vld [vmem:[#allocation2 + $0x40] sm:$0x3]
    %40 = vrot.lane.b32.xlu0 %v22, 127
    %v41 = vpop.permute.xlu0 %40
    %42 = vrot.lane.b32.xlu0 %v23, 127
    %v43 = vpop.permute.xlu0 %42
    %44 = vrot.lane.b32.xlu0 %v24, 127
    %v45 = vpop.permute.xlu0 %44
    %46 = vrot.lane.b32.xlu0 %v25, 127
    %v47 = vpop.permute.xlu0 %46
    %48 = vrot.lane.b32.xlu0 %v26, 127
    %v49 = vpop.permute.xlu0 %48
    %50 = vrot.lane.b32.xlu0 %v27, 127
    %v51 = vpop.permute.xlu0 %50
    %52 = vrot.lane.b32.xlu0 %v28, 127
    %v53 = vpop.permute.xlu0 %52
    %54 = vrot.lane.b32.xlu0 %v29, 127
    %v55 = vpop.permute.xlu0 %54
    %56 = vrot.lane.b32.xlu0 %v30, 127
    %v57 = vpop.permute.xlu0 %56
    %v67 = vadd.f32 %v22, %v41
    %v68 = vadd.f32 %v23, %v43
    %v69 = vadd.f32 %v24, %v45
    %v70 = vadd.f32 %v25, %v47
    %v71 = vadd.f32 %v26, %v49
    %v72 = vadd.f32 %v27, %v51
    %v73 = vadd.f32 %v28, %v53
    %v74 = vadd.f32 %v29, %v55
    %v75 = vadd.f32 %v30, %v57
    %vm85 = vcmask 1046528
    %v86 = vrot.slane %v67, 1
    %v87 = vrot.slane %v68, 1
    %v88 = vsel %vm85, %v86, %v87
    %v89 = vrot.slane %v69, 1
    %v90 = vsel %vm85, %v87, %v89
    %v91 = vrot.slane %v70, 1
    %v92 = vrot.slane %v71, 1
    %v93 = vsel %vm85, %v91, %v92
    %v94 = vrot.slane %v72, 1
    %v95 = vsel %vm85, %v92, %v94
    %v96 = vrot.slane %v73, 1
    %v97 = vrot.slane %v74, 1
    %v98 = vsel %vm85, %v96, %v97
    %v99 = vrot.slane %v75, 1
    %v100 = vsel %vm85, %v97, %v99
    %v110 = vadd.f32 %v67, %v88
    %v111 = vadd.f32 %v68, %v90
    %v112 = vadd.f32 %v69, %v89
    %v113 = vadd.f32 %v70, %v93
    %v114 = vadd.f32 %v71, %v95
    %v115 = vadd.f32 %v72, %v94
    %v116 = vadd.f32 %v73, %v98
    %v117 = vadd.f32 %v74, %v100
    %v118 = vadd.f32 %v75, %v99
    %v119 = vmul.f32 %v110, 0.25
    %v120 = vmul.f32 %v111, 0.25
    %v121 = vmul.f32 %v112, 0.25
    %v122 = vmul.f32 %v113, 0.25
    %v123 = vmul.f32 %v114, 0.25
    %v124 = vmul.f32 %v115, 0.25
    %v125 = vmul.f32 %v116, 0.25
    %v126 = vmul.f32 %v117, 0.25
    %v127 = vmul.f32 %v118, 0.25
    %v128 = vtanh.pop %v119
    %v129 = vtanh.pop %v120
    %v130 = vtanh.pop %v121
    %v131 = vtanh.pop %v122
    %v132 = vtanh.pop %v123
    %v133 = vtanh.pop %v124
    %v134 = vtanh.pop %v125
    %v135 = vtanh.pop %v126
    %v136 = vtanh.pop %v127
    %v137 = vmul.f32 %v119, %v119
    %v138 = vmul.f32 %v120, %v120
    %v139 = vmul.f32 %v121, %v121
    %v140 = vmul.f32 %v122, %v122
    %v141 = vmul.f32 %v123, %v123
    %v142 = vmul.f32 %v124, %v124
    %v143 = vmul.f32 %v125, %v125
    %v144 = vmul.f32 %v126, %v126
    %v145 = vmul.f32 %v127, %v127
    %v146 = vadd.f32 %v128, %v137
    %v147 = vadd.f32 %v129, %v138
    %v148 = vadd.f32 %v130, %v139
    %v149 = vadd.f32 %v131, %v140
    %v150 = vadd.f32 %v132, %v141
    %v151 = vadd.f32 %v133, %v142
    %v152 = vadd.f32 %v134, %v143
    %v153 = vadd.f32 %v135, %v144
    %v154 = vadd.f32 %v136, %v145
    %v155 = vmul.f32 %v22, %v146
    %v156 = vmul.f32 %v23, %v147
    %v157 = vmul.f32 %v24, %v148
    %v158 = vmul.f32 %v25, %v149
    %v159 = vmul.f32 %v26, %v150
    %v160 = vmul.f32 %v27, %v151
    %v161 = vmul.f32 %v28, %v152
    %v162 = vmul.f32 %v29, %v153
    %v163 = vmul.f32 %v30, %v154
    %vm164 = vcmask 138240
    %165 = vst.msk [vmem:[%s1] sm:$0xff] %vm164, %v155
    %166 = vst.msk [vmem:[%s1 + $0x8] sm:$0xff] %vm164, %v156
    %vm167 = vcmask 131072
    %168 = vst.msk [vmem:[%s1 + $0x10] sm:$0x1] %vm167, %v157
    %169 = vst.msk [vmem:[%s1 + $0x18] sm:$0xff] %vm164, %v158
    %170 = vst.msk [vmem:[%s1 + $0x20] sm:$0xff] %vm164, %v159
    %171 = vst.msk [vmem:[%s1 + $0x28] sm:$0x1] %vm167, %v160
    %172 = vst.msk [vmem:[%s1 + $0x30] sm:$0xff] %vm164, %v161
    %173 = vst.msk [vmem:[%s1 + $0x38] sm:$0xff] %vm164, %v162
    %174 = vst.msk [vmem:[%s1 + $0x40] sm:$0x1] %vm167, %v163
    // Predicated region
    $region10: #{tpu_custom_call.1} parent=1 // pred_check
      _
    $region11: #{tpu_custom_call.1} parent=1 // pred_check_branch
      %176 = sbr.rel (0) target = $region13
    $region12: #{tpu_custom_call.1} parent=1 // pred_region
      _
    $region13: #{tpu_custom_call.1} parent=1 // pred_fallthru
      _
    // Predicated region
    $region14: #{tpu_custom_call.1} parent=1 // pred_check
      _
    $region15: #{tpu_custom_call.1} parent=1 // pred_check_branch
      %178 = sbr.rel (0) target = $region17
    $region16: #{tpu_custom_call.1} parent=1 // pred_region
      _
    $region17: #{tpu_custom_call.1} parent=1 // pred_fallthru
      _
    %179 = vsyncpa [#allocation3], 1

</llo_original>
